<compile_context>
chip_gen: v5e
topology: v5e:2x2
jax: 0.10.0
libtpu: 0.0.40
codegen_flags: <defaults>
</compile_context>

<pallas_src>
import jax
import jax.numpy as jnp
from jax.experimental import pallas as pl
from jax.experimental.pallas import tpu as pltpu  # noqa: F401  (TPU backend)


def stacked_copy_kernel(x1_ref, x2_ref, o_ref):
    # Two whole-sub-block stores at a non-minor axis offset: plain vreg
    # stores, no cross-lane/sublane data movement.
    o_ref[:, 0, :, :] = x1_ref[...]
    o_ref[:, 1, :, :] = x2_ref[...]


def concat_kernel(x1_ref, x2_ref, o_ref):
    # Fallback path (only used if c1 != c2): build result in registers and
    # issue a single whole-block store.
    o_ref[...] = jnp.concatenate([x1_ref[...], x2_ref[...]], axis=1)


def model_forward(x1, x2):
    # Promote to a common dtype (mirrors torch.cat promotion).
    out_dtype = jnp.promote_types(x1.dtype, x2.dtype)
    if x1.dtype != out_dtype:
        x1 = x1.astype(out_dtype)
    if x2.dtype != out_dtype:
        x2 = x2.astype(out_dtype)

    b, c1, w = x1.shape
    b2, c2, w2 = x2.shape
    assert (b, w) == (b2, w2), "cat(dim=1) requires matching batch/width"
    out_c = c1 + c2

    # The PyTorch slice [:, 0:9223372036854775807, 0:6] clamps to (out_c, w)
    # (6 > w and 2**63-1 > out_c), so the output is the full concat.

    if c1 == c2:
        # Fast path: (b, 2, c, w) output, two sub-block stores, then a free
        # row-major merge reshape in the wrapper.
        stacked = pl.pallas_call(
            stacked_copy_kernel,
            out_shape=jax.ShapeDtypeStruct((b, 2, c1, w), out_dtype),
            in_specs=[
                pl.BlockSpec((b, c1, w), lambda: (0, 0, 0)),
                pl.BlockSpec((b, c2, w), lambda: (0, 0, 0)),
            ],
            out_specs=pl.BlockSpec((b, 2, c1, w), lambda: (0, 0, 0, 0)),
        )(x1, x2)
        return stacked.reshape(b, out_c, w)

    # General fallback (not hit for the spec's shapes).
    return pl.pallas_call(
        concat_kernel,
        out_shape=jax.ShapeDtypeStruct((b, out_c, w), out_dtype),
        in_specs=[
            pl.BlockSpec((b, c1, w), lambda: (0, 0, 0)),
            pl.BlockSpec((b, c2, w), lambda: (0, 0, 0)),
        ],
        out_specs=pl.BlockSpec((b, out_c, w), lambda: (0, 0, 0)),
    )(x1, x2)


if __name__ == "__main__":
    key = jax.random.PRNGKey(0)
    k1, k2 = jax.random.split(key)
    x1 = jax.random.normal(k1, (3, 7, 5), dtype=jnp.float32)
    x2 = jax.random.normal(k2, (3, 7, 5), dtype=jnp.float32)

    out = model_forward(x1, x2)
    out = jax.block_until_ready(out)

    # Reference: torch.cat(dim=1) + clamped slice == plain concatenation.
    ref = jnp.concatenate([x1, x2], axis=1)[:, 0:9223372036854775807, 0:6]
    assert out.shape == ref.shape == (3, 14, 5), out.shape
    # Exact equality: this is a pure copy, tolerance could hide layout bugs.
    assert bool(jnp.all(out == ref)), "mismatch vs reference"

    print("KERNEL_OK")
</pallas_src>

<mosaic_0001>
module attributes {stable_mosaic.version = 11 : i64} {
  func.func @stacked_copy_kernel(%arg0: memref<3x7x5xf32, #tpu.memory_space<vmem>>, %arg1: memref<3x7x5xf32, #tpu.memory_space<vmem>>, %arg2: memref<3x2x7x5xf32, #tpu.memory_space<vmem>>) attributes {dimension_semantics = [], scalar_prefetch = 0 : i64, scratch_operands = 0 : i64, tpu.core_type = #tpu.core_type<tc>} {
    %c0 = arith.constant 0 : index
    %c0_0 = arith.constant 0 : index
    %c0_1 = arith.constant 0 : index
    %0 = vector.load %arg0[%c0, %c0_0, %c0_1] : memref<3x7x5xf32, #tpu.memory_space<vmem>>, vector<3x7x5xf32>
    %c0_2 = arith.constant 0 : index
    %c0_3 = arith.constant 0 : index
    %c0_4 = arith.constant 0 : index
    %c0_5 = arith.constant 0 : index
    %1 = vector.load %arg2[%c0_2, %c0_3, %c0_4, %c0_5] : memref<3x2x7x5xf32, #tpu.memory_space<vmem>>, vector<3x1x7x5xf32>
    %2 = vector.shape_cast %1 : vector<3x1x7x5xf32> to vector<3x7x5xf32>
    %3 = vector.shape_cast %0 : vector<3x7x5xf32> to vector<3x1x7x5xf32>
    tpu.vector_store %arg2[%c0_2, %c0_3, %c0_4, %c0_5], %3 {strides = array<i32>} : memref<3x2x7x5xf32, #tpu.memory_space<vmem>>, vector<3x1x7x5xf32>,
    %c0_6 = arith.constant 0 : index
    %c0_7 = arith.constant 0 : index
    %c0_8 = arith.constant 0 : index
    %4 = vector.load %arg1[%c0_6, %c0_7, %c0_8] : memref<3x7x5xf32, #tpu.memory_space<vmem>>, vector<3x7x5xf32>
    %c0_9 = arith.constant 0 : index
    %c1 = arith.constant 1 : index
    %c0_10 = arith.constant 0 : index
    %c0_11 = arith.constant 0 : index
    %5 = vector.load %arg2[%c0_9, %c1, %c0_10, %c0_11] : memref<3x2x7x5xf32, #tpu.memory_space<vmem>>, vector<3x1x7x5xf32>
    %6 = vector.shape_cast %5 : vector<3x1x7x5xf32> to vector<3x7x5xf32>
    %7 = vector.shape_cast %4 : vector<3x7x5xf32> to vector<3x1x7x5xf32>
    tpu.vector_store %arg2[%c0_9, %c1, %c0_10, %c0_11], %7 {strides = array<i32>} : memref<3x2x7x5xf32, #tpu.memory_space<vmem>>, vector<3x1x7x5xf32>,
    return
  }
}

</mosaic_0001>

<llo_original>
// kernel: tpu_custom_call.1
$region0: #{tpu_custom_call.1}
  #allocation0 [shape = 'u32[]', space=smem, size = 0x4, offset = 0x4, fixed_abs, tag = 'smem constant byte address 0x4 - core index']
  #allocation1 [shape = 'u32[72,128]{1,0:T(1,128)}', space=vmem, size = 0x9000, scoped, tag = 'internal scratch']
  %s0 = inlined_call_operand.vmem [shape: f32[3,7,5], index: 0, kind: input, shape index: {}]
  %s1 = inlined_call_operand.vmem [shape: f32[3,7,5], index: 1, kind: input, shape index: {}]
  %s2 = inlined_call_operand.vmem [shape: f32[3,2,7,5], index: 2, kind: output, shape index: {}]
  %s3 = sld [smem:[#allocation0]]
  $region18: #{tpu_custom_call.1} parent=0
    _
  %s5 = ssub.s32 1, %s3
  %s6 = scalar_select 0, %s5, %s3
  // Predicated region
  $region2: #{tpu_custom_call.1} parent=0 // pred_check
    _
  $region3: #{tpu_custom_call.1} parent=0 // pred_check_branch
    %8 = sbr.rel (0) target = $region5
  $region4: #{tpu_custom_call.1} parent=0 // pred_region
    _
  $region5: #{tpu_custom_call.1} parent=0 // pred_fallthru
    _
  // Predicated region
  $region6: #{tpu_custom_call.1} parent=0 // pred_check
    _
  $region7: #{tpu_custom_call.1} parent=0 // pred_check_branch
    %10 = sbr.rel (0) target = $region9
  $region8: #{tpu_custom_call.1} parent=0 // pred_region
    _
  $region9: #{tpu_custom_call.1} parent=0 // pred_fallthru
    _
  %v11 = vld [vmem:[%s0] sm:$0x7f]
  %v12 = vld [vmem:[%s0 + $0x8] sm:$0x7f]
  %v13 = vld [vmem:[%s0 + $0x10] sm:$0x7f]
  %vm14 = vcmask 38912
  %15 = vst.msk [vmem:[%s2] sm:$0x7f] %vm14, %v11
  %16 = vst.msk [vmem:[%s2 + $0x10] sm:$0x7f] %vm14, %v12
  %17 = vst.msk [vmem:[%s2 + $0x20] sm:$0x7f] %vm14, %v13
  %v18 = vld [vmem:[%s1] sm:$0x7f]
  %v19 = vld [vmem:[%s1 + $0x8] sm:$0x7f]
  %v20 = vld [vmem:[%s1 + $0x10] sm:$0x7f]
  %s21 = scalar_lea.vmem %s2, 8
  %22 = vst.msk [vmem:[%s21] sm:$0x7f] %vm14, %v18
  %23 = vst.msk [vmem:[%s21 + $0x10] sm:$0x7f] %vm14, %v19
  %24 = vst.msk [vmem:[%s21 + $0x20] sm:$0x7f] %vm14, %v20
  // Predicated region
  $region10: #{tpu_custom_call.1} parent=0 // pred_check
    _
  $region11: #{tpu_custom_call.1} parent=0 // pred_check_branch
    %26 = sbr.rel (0) target = $region13
  $region12: #{tpu_custom_call.1} parent=0 // pred_region
    _
  $region13: #{tpu_custom_call.1} parent=0 // pred_fallthru
    _
  // Predicated region
  $region14: #{tpu_custom_call.1} parent=0 // pred_check
    _
  $region15: #{tpu_custom_call.1} parent=0 // pred_check_branch
    %28 = sbr.rel (0) target = $region17
  $region16: #{tpu_custom_call.1} parent=0 // pred_region
    _
  $region17: #{tpu_custom_call.1} parent=0 // pred_fallthru
    _

</llo_original>
